<compile_context>
chip_gen: v6e
topology: v6e:2x2x1
jax: 0.10.0
libtpu: 0.0.40
codegen_flags: <defaults>
</compile_context>

<pallas_src>
import functools
import inspect

import numpy as np
import jax
import jax.numpy as jnp
from jax.experimental import pallas as pl
from jax.experimental.pallas import tpu as pltpu

LN_EPS = 1e-6        # matches nn.LayerNorm(eps=1e-06)
_NEG = -1e9          # matches masked_fill(mask == 0, -1e9)


# ----------------------------- small helpers ------------------------------- #

def _round_up(x, m):
    return ((x + m - 1) // m) * m


def _row_plan(m):
    """Row tiling for row-parallel kernels: one step if it fits, else 512-row tiles."""
    if m <= 512:
        tile = _round_up(m, 16)          # bf16-native sublane multiple
        return tile, tile
    tile = 512
    return tile, _round_up(m, tile)


def _pad_rows(x, mp):
    return x if x.shape[0] == mp else jnp.pad(x, ((0, mp - x.shape[0]), (0, 0)))


try:
    _HAS_BUFFERED = (hasattr(pl, "Buffered")
                     and "pipeline_mode" in inspect.signature(pl.BlockSpec).parameters)
except Exception:  # pragma: no cover - defensive feature detection
    _HAS_BUFFERED = False


def _resident_spec(shape):
    """Constant-index (VMEM-resident) BlockSpec; single-buffered when supported."""
    index_map = lambda *_: (0,) * len(shape)
    if _HAS_BUFFERED:
        try:
            return pl.BlockSpec(shape, index_map, pipeline_mode=pl.Buffered(1))
        except TypeError:
            pass
    return pl.BlockSpec(shape, index_map)


# --------------------------- in-kernel primitives --------------------------- #

def _residual_ln(y, residual, g, b):
    """f32 residual add + LayerNorm(eps=1e-6); returns f32."""
    y = y + residual
    mu = jnp.mean(y, axis=-1, keepdims=True)
    var = jnp.mean(jnp.square(y - mu), axis=-1, keepdims=True)
    return (y - mu) * jax.lax.rsqrt(var + LN_EPS) * g + b


def _attn_heads(q, k, v, bias, n_head, d_k, d_v):
    """Batched multi-head scaled-dot-product attention (scale folded into Q weights).

    q: (Lq, H*dk) f32, k: (Lk, H*dk) f32, v: (Lk, H*dv) f32.
    bias: f32 broadcastable to (Lq, Lk) (already -1e9 where masked), or None.
    Returns concatenated heads (Lq, H*dv) f32.
    """
    def split(a, d):  # (L, H*d) -> (H, L, d) via static lane slices + leading stack
        return jnp.stack([a[:, h * d:(h + 1) * d] for h in range(n_head)], axis=0)

    qh = split(q, d_k).astype(jnp.bfloat16)
    kh = split(k, d_k).astype(jnp.bfloat16)
    vh = split(v, d_v).astype(jnp.bfloat16)

    s = jnp.einsum('hqd,hkd->hqk', qh, kh,
                   preferred_element_type=jnp.float32)          # (H, Lq, Lk)
    if bias is not None:
        s = s + bias[None]              # mask applied once, broadcast over heads
    s = s - jnp.max(s, axis=-1, keepdims=True)
    p = jnp.exp(s)
    p = p * pl.reciprocal(jnp.sum(p, axis=-1, keepdims=True), approx=True)
    o = jnp.einsum('hqk,hkd->hqd', p.astype(jnp.bfloat16), vh,
                   preferred_element_type=jnp.float32)          # (H, Lq, dv)
    return jnp.concatenate([o[h] for h in range(n_head)], axis=-1)


# ------------------------------ Pallas kernels ------------------------------ #

def _decoder_layer_kernel(*refs, n_head, d_k, d_v, use_src_mask):
    """One full decoder layer (self-MHA + cross-MHA + FFN) for one batch element."""
    if use_src_mask:
        (dec_ref, enc_ref, tpad_ref, spad_ref,
         slf_wqkv, slf_wo, slf_g, slf_b,
         crs_wq, crs_wkv, crs_wo, crs_g, crs_b,
         ffn_w1, ffn_b1, ffn_w2, ffn_b2, ffn_g, ffn_b,
         out_ref) = refs
    else:
        (dec_ref, enc_ref, tpad_ref,
         slf_wqkv, slf_wo, slf_g, slf_b,
         crs_wq, crs_wkv, crs_wo, crs_g, crs_b,
         ffn_w1, ffn_b1, ffn_w2, ffn_b2, ffn_g, ffn_b,
         out_ref) = refs
        spad_ref = None

    x = dec_ref[0].astype(jnp.float32)            # (L, Dm) residual carried in f32
    L = x.shape[0]
    nqk = n_head * d_k

    # ---------------- self-attention (fused QKV, in-kernel causal mask) --------
    qkv = jnp.dot(x.astype(jnp.bfloat16), slf_wqkv[...],
                  preferred_element_type=jnp.float32)           # (L, H*(2dk+dv))
    q, k, v = qkv[:, :nqk], qkv[:, nqk:2 * nqk], qkv[:, 2 * nqk:]
    rows = jax.lax.broadcasted_iota(jnp.int32, (L, L), 0)
    cols = jax.lax.broadcasted_iota(jnp.int32, (L, L), 1)
    allowed = (rows >= cols) & (tpad_ref[0] != 0)               # causal & key-pad
    bias = jnp.where(allowed, 0.0, _NEG)                        # hoisted, one pass
    o = _attn_heads(q, k, v, bias, n_head, d_k, d_v)
    y = jnp.dot(o.astype(jnp.bfloat16), slf_wo[...],
                preferred_element_type=jnp.float32)
    x = _residual_ln(y, x, slf_g[...], slf_b[...])

    # ---------------- cross-attention (fused KV) -------------------------------
    mem = enc_ref[0].astype(jnp.bfloat16)                       # (Ls, Denc)
    q = jnp.dot(x.astype(jnp.bfloat16), crs_wq[...],
                preferred_element_type=jnp.float32)
    kv = jnp.dot(mem, crs_wkv[...], preferred_element_type=jnp.float32)
    k, v = kv[:, :nqk], kv[:, nqk:]
    cbias = (jnp.where(spad_ref[0] != 0, 0.0, _NEG)             # (1, Ls)
             if use_src_mask else None)                         # statically skipped
    o = _attn_heads(q, k, v, cbias, n_head, d_k, d_v)
    y = jnp.dot(o.astype(jnp.bfloat16), crs_wo[...],
                preferred_element_type=jnp.float32)
    x = _residual_ln(y, x, crs_g[...], crs_b[...])

    # ---------------- position-wise feed-forward -------------------------------
    h = jnp.dot(x.astype(jnp.bfloat16), ffn_w1[...],
                preferred_element_type=jnp.float32) + ffn_b1[...]
    h = jnp.maximum(h, 0.0)
    y = jnp.dot(h.astype(jnp.bfloat16), ffn_w2[...],
                preferred_element_type=jnp.float32) + ffn_b2[...]
    x = _residual_ln(y, x, ffn_g[...], ffn_b[...])

    out_ref[0] = x.astype(out_ref.dtype)


def _ln_kernel(x_ref, g_ref, b_ref, o_ref):
    x = x_ref[...].astype(jnp.float32)
    mu = jnp.mean(x, axis=-1, keepdims=True)
    var = jnp.mean(jnp.square(x - mu), axis=-1, keepdims=True)
    y = (x - mu) * jax.lax.rsqrt(var + LN_EPS)
    o_ref[...] = (y * g_ref[...] + b_ref[...]).astype(o_ref.dtype)


def _linear_kernel(x_ref, w_ref, b_ref, o_ref):
    y = jnp.dot(x_ref[...].astype(jnp.bfloat16), w_ref[...],
                preferred_element_type=jnp.float32)
    o_ref[...] = (y + b_ref[...]).astype(o_ref.dtype)


# ------------------------------ kernel wrappers ----------------------------- #

def layer_norm_rows(x, g, b, out_dtype):
    m, d = x.shape
    tile, mp = _row_plan(m)
    xp = _pad_rows(x, mp)
    out = pl.pallas_call(
        _ln_kernel,
        out_shape=jax.ShapeDtypeStruct((mp, d), out_dtype),
        grid=(mp // tile,),
        in_specs=[pl.BlockSpec((tile, d), lambda i: (i, 0)),
                  _resident_spec(g.shape),
                  _resident_spec(b.shape)],
        out_specs=pl.BlockSpec((tile, d), lambda i: (i, 0)),
        compiler_params=pltpu.CompilerParams(dimension_semantics=("parallel",)),
    )(xp, g, b)
    return out[:m] if mp != m else out


def output_projection(x, w, b):
    """logits = x @ w + b, rows and vocab both tiled on 'parallel' grid axes."""
    m, d = x.shape
    n = w.shape[1]
    tile_m, mp = _row_plan(m)
    if n <= 512:
        tile_n, np_ = n, n
    else:
        tile_n = 512
        np_ = _round_up(n, tile_n)
    xp = _pad_rows(x, mp)
    wp = w if np_ == n else jnp.pad(w, ((0, 0), (0, np_ - n)))
    bp = b if np_ == n else jnp.pad(b, ((0, 0), (0, np_ - n)))
    w_spec = (_resident_spec(wp.shape) if np_ == tile_n
              else pl.BlockSpec((d, tile_n), lambda i, j: (0, j)))
    b_spec = (_resident_spec(bp.shape) if np_ == tile_n
              else pl.BlockSpec((1, tile_n), lambda i, j: (0, j)))
    out = pl.pallas_call(
        _linear_kernel,
        out_shape=jax.ShapeDtypeStruct((mp, np_), jnp.float32),
        grid=(mp // tile_m, np_ // tile_n),
        in_specs=[pl.BlockSpec((tile_m, d), lambda i, j: (i, 0)), w_spec, b_spec],
        out_specs=pl.BlockSpec((tile_m, tile_n), lambda i, j: (i, j)),
        compiler_params=pltpu.CompilerParams(
            dimension_semantics=("parallel", "parallel")),
    )(xp, wp, bp)
    return out[:m, :n]


def decoder_layer(dec, enc, tpad, spad, lp, *, n_head, d_k, d_v):
    B, L, Dm = dec.shape
    use_src_mask = spad is not None
    kern = functools.partial(_decoder_layer_kernel, n_head=n_head, d_k=d_k,
                             d_v=d_v, use_src_mask=use_src_mask)

    def batched(a):
        return pl.BlockSpec((1,) + a.shape[1:], lambda bi: (bi, 0, 0))

    args = [dec, enc, tpad] + ([spad] if use_src_mask else [])
    in_specs = [batched(a) for a in args]
    weights = [lp['slf_wqkv'], lp['slf_wo'], lp['slf_g'], lp['slf_b'],
               lp['crs_wq'], lp['crs_wkv'], lp['crs_wo'], lp['crs_g'], lp['crs_b'],
               lp['ffn_w1'], lp['ffn_b1'], lp['ffn_w2'], lp['ffn_b2'],
               lp['ffn_g'], lp['ffn_b']]
    in_specs += [_resident_spec(w.shape) for w in weights]   # weights VMEM-resident
    args += weights

    return pl.pallas_call(
        kern,
        out_shape=jax.ShapeDtypeStruct((B, L, Dm), dec.dtype),
        grid=(B,),
        in_specs=in_specs,
        out_specs=pl.BlockSpec((1, L, Dm), lambda bi: (bi, 0, 0)),
        compiler_params=pltpu.CompilerParams(
            dimension_semantics=("parallel",),
            vmem_limit_bytes=64 * 1024 * 1024),
    )(*args)


# -------------------------------- parameters -------------------------------- #

def sinusoid_table(n_position, d_hid):
    pos = np.arange(n_position)[:, None].astype(np.float64)
    hid = np.arange(d_hid)[None, :]
    angle = pos / np.power(10000.0, 2 * (hid // 2) / d_hid)
    table = np.zeros((n_position, d_hid))
    table[:, 0::2] = np.sin(angle[:, 0::2])
    table[:, 1::2] = np.cos(angle[:, 1::2])
    return jnp.asarray(table, dtype=jnp.float32)


def init_params(key, *, n_trg_vocab, d_word_vec, n_layers, n_head, d_k, d_v,
                d_encoder, d_model, d_inner, pad_idx, n_position):
    keys = iter(jax.random.split(key, 16 * n_layers + 8))

    def nrm(shape, scale=0.05):
        return jax.random.normal(next(keys), shape, jnp.float32) * scale

    inv_temp = 1.0 / (d_k ** 0.5)   # folded into Q projection columns (no in-kernel mul)

    emb = nrm((n_trg_vocab, d_word_vec)).at[pad_idx].set(0.0)   # padding_idx row zero

    params = {
        'emb': emb,
        'pos': sinusoid_table(n_position, d_word_vec),
        'ln_g': jnp.ones((1, d_model), jnp.float32),
        'ln_b': jnp.zeros((1, d_model), jnp.float32),
        'out_w': nrm((d_model, n_trg_vocab)).astype(jnp.bfloat16),
        'out_b': jnp.zeros((1, n_trg_vocab), jnp.float32),
        'layers': [],
    }
    for _ in range(n_layers):
        wq = nrm((d_model, n_head * d_k)) * inv_temp
        wk = nrm((d_model, n_head * d_k))
        wv = nrm((d_model, n_head * d_v))
        cq = nrm((d_model, n_head * d_k)) * inv_temp
        ck = nrm((d_encoder, n_head * d_k))
        cv = nrm((d_encoder, n_head * d_v))
        lp = {
            # Q|K|V fused (single wide MXU matmul), Q pre-scaled by 1/sqrt(d_k)
            'slf_wqkv': jnp.concatenate([wq, wk, wv], 1).astype(jnp.bfloat16),
            'slf_wo': nrm((n_head * d_v, d_model)).astype(jnp.bfloat16),
            'slf_g': jnp.ones((1, d_model), jnp.float32),
            'slf_b': jnp.zeros((1, d_model), jnp.float32),
            'crs_wq': cq.astype(jnp.bfloat16),
            'crs_wkv': jnp.concatenate([ck, cv], 1).astype(jnp.bfloat16),
            'crs_wo': nrm((n_head * d_v, d_model)).astype(jnp.bfloat16),
            'crs_g': jnp.ones((1, d_model), jnp.float32),
            'crs_b': jnp.zeros((1, d_model), jnp.float32),
            'ffn_w1': nrm((d_model, d_inner)).astype(jnp.bfloat16),
            'ffn_b1': jnp.zeros((1, d_inner), jnp.float32),
            'ffn_w2': nrm((d_inner, d_model)).astype(jnp.bfloat16),
            'ffn_b2': jnp.zeros((1, d_model), jnp.float32),
            'ffn_g': jnp.ones((1, d_model), jnp.float32),
            'ffn_b': jnp.zeros((1, d_model), jnp.float32),
        }
        params['layers'].append(lp)
    return params


# ------------------------------- forward pass -------------------------------- #

def transformer_decoder(params, trg_seq, enc_output, *, trg_pad=None, src_pad=None,
                        n_head, d_k, d_v, d_model, scale_emb=False):
    """Decoder forward. Masks are key-padding vectors (B, L)/(B, Ls); the causal
    (subsequent-position) mask is generated in-kernel — equivalent to the PyTorch
    module called with trg_mask = pad_mask & subsequent_mask, src_mask = pad_mask."""
    # TODO(synk): arbitrary dense (B,L,L) attention masks are not supported on this
    #             fast path (only pad x causal); return_attns outputs not materialized.
    B, L = trg_seq.shape

    # Embedding gather + positional add stay in XLA glue (data-dependent gather).
    x = params['emb'][trg_seq]                                   # (B, L, Dm) f32
    if scale_emb:
        x = x * (d_model ** 0.5)
    x = x + params['pos'][:L][None, :, :]
    # dropout: eval-mode identity

    # Initial LayerNorm; inter-layer activations carried as bf16 (halved HBM traffic).
    dec = layer_norm_rows(x.reshape(B * L, d_model), params['ln_g'],
                          params['ln_b'], jnp.bfloat16).reshape(B, L, d_model)

    tpad = (jnp.ones((B, 1, L), jnp.int32) if trg_pad is None
            else trg_pad.reshape(B, 1, L).astype(jnp.int32))
    spad = None if src_pad is None else src_pad.reshape(B, 1, -1).astype(jnp.int32)

    enc_bf16 = enc_output.astype(jnp.bfloat16)

    for lp in params['layers']:
        # one fused kernel per layer: self-MHA + cross-MHA + FFN, dec stays in VMEM
        dec = decoder_layer(dec, enc_bf16, tpad, spad, lp,
                            n_head=n_head, d_k=d_k, d_v=d_v)

    logits = output_projection(dec.reshape(B * L, d_model),
                               params['out_w'], params['out_b'])
    return (logits.reshape(B, L, -1),)            # mirrors PyTorch (dec_output,)


# ----------------------------------- main ------------------------------------ #

if __name__ == "__main__":
    n_trg_vocab = 32
    d_word_vec = d_model = 32
    n_layers = 2
    n_head = 2
    d_k = d_v = 16
    d_encoder = 48
    d_inner = 64
    pad_idx = 0
    n_position = 100
    B, L, Ls = 2, 8, 16

    key = jax.random.PRNGKey(0)
    kp, ks, ke = jax.random.split(key, 3)

    params = init_params(
        kp, n_trg_vocab=n_trg_vocab, d_word_vec=d_word_vec, n_layers=n_layers,
        n_head=n_head, d_k=d_k, d_v=d_v, d_encoder=d_encoder, d_model=d_model,
        d_inner=d_inner, pad_idx=pad_idx, n_position=n_position)

    trg_seq = jax.random.randint(ks, (B, L), 1, n_trg_vocab)       # no pads in demo
    enc_output = jax.random.normal(ke, (B, Ls, d_encoder), jnp.float32)
    trg_pad = (trg_seq != pad_idx).astype(jnp.int32)               # (B, L) key-pad

    out = transformer_decoder(
        params, trg_seq, enc_output, trg_pad=trg_pad, src_pad=None,
        n_head=n_head, d_k=d_k, d_v=d_v, d_model=d_model, scale_emb=False)

    out = jax.block_until_ready(out)
    logits = out[0]
    assert logits.shape == (B, L, n_trg_vocab), logits.shape
    assert bool(jnp.all(jnp.isfinite(logits)))
    print("KERNEL_OK")
</pallas_src>

<mosaic_0001>
module attributes {stable_mosaic.version = 11 : i64} {
  func.func @_ln_kernel(%arg0: i32, %arg1: memref<16x32xf32, #tpu.memory_space<vmem>>, %arg2: memref<1x32xf32, #tpu.memory_space<vmem>>, %arg3: memref<1x32xf32, #tpu.memory_space<vmem>>, %arg4: memref<16x32xbf16, #tpu.memory_space<vmem>>) attributes {dimension_semantics = [#tpu.dimension_semantics<parallel>], iteration_bounds = array<i64: 1>, scalar_prefetch = 0 : i64, scratch_operands = 0 : i64, tpu.core_type = #tpu.core_type<tc>, window_params = [{transform_indices = @transform_0, window_bounds = array<i64: 16, 32>}, {pipeline_mode = #tpu.pipeline_mode<synchronous>, transform_indices = @transform_1, window_bounds = array<i64: 1, 32>}, {pipeline_mode = #tpu.pipeline_mode<synchronous>, transform_indices = @transform_2, window_bounds = array<i64: 1, 32>}, {transform_indices = @transform_3, window_bounds = array<i64: 16, 32>}]} {
    %c0 = arith.constant 0 : index
    %c0_0 = arith.constant 0 : index
    %0 = vector.load %arg1[%c0, %c0_0] : memref<16x32xf32, #tpu.memory_space<vmem>>, vector<16x32xf32>
    %cst = arith.constant dense<0.000000e+00> : vector<16xf32>
    %1 = vector.multi_reduction <add>, %0, %cst [1] : vector<16x32xf32> to vector<16xf32>
    %2 = vector.shape_cast %1 : vector<16xf32> to vector<16x1xf32>
    %cst_1 = arith.constant 3.200000e+01 : f32
    %3 = vector.broadcast %cst_1 : f32 to vector<16x1xf32>
    %4 = arith.divf %2, %3 : vector<16x1xf32>
    %5 = vector.broadcast %4 : vector<16x1xf32> to vector<16x32xf32>
    %6 = arith.subf %0, %5 : vector<16x32xf32>
    %7 = arith.mulf %6, %6 : vector<16x32xf32>
    %cst_2 = arith.constant dense<0.000000e+00> : vector<16xf32>
    %8 = vector.multi_reduction <add>, %7, %cst_2 [1] : vector<16x32xf32> to vector<16xf32>
    %9 = vector.shape_cast %8 : vector<16xf32> to vector<16x1xf32>
    %cst_3 = arith.constant 3.200000e+01 : f32
    %10 = vector.broadcast %cst_3 : f32 to vector<16x1xf32>
    %11 = arith.divf %9, %10 : vector<16x1xf32>
    %12 = vector.broadcast %4 : vector<16x1xf32> to vector<16x32xf32>
    %13 = arith.subf %0, %12 : vector<16x32xf32>
    %cst_4 = arith.constant 9.99999997E-7 : f32
    %14 = vector.broadcast %cst_4 : f32 to vector<16x1xf32>
    %15 = arith.addf %11, %14 : vector<16x1xf32>
    %16 = math.rsqrt %15 : vector<16x1xf32>
    %17 = vector.broadcast %16 : vector<16x1xf32> to vector<16x32xf32>
    %18 = arith.mulf %13, %17 : vector<16x32xf32>
    %c0_5 = arith.constant 0 : index
    %c0_6 = arith.constant 0 : index
    %19 = vector.load %arg2[%c0_5, %c0_6] : memref<1x32xf32, #tpu.memory_space<vmem>>, vector<1x32xf32>
    %20 = vector.broadcast %19 : vector<1x32xf32> to vector<16x32xf32>
    %21 = arith.mulf %18, %20 : vector<16x32xf32>
    %c0_7 = arith.constant 0 : index
    %c0_8 = arith.constant 0 : index
    %22 = vector.load %arg3[%c0_7, %c0_8] : memref<1x32xf32, #tpu.memory_space<vmem>>, vector<1x32xf32>
    %23 = vector.broadcast %22 : vector<1x32xf32> to vector<16x32xf32>
    %24 = arith.addf %21, %23 : vector<16x32xf32>
    %25 = arith.truncf %24 : vector<16x32xf32> to vector<16x32xbf16>
    %c0_9 = arith.constant 0 : index
    %c0_10 = arith.constant 0 : index
    %26 = vector.load %arg4[%c0_9, %c0_10] : memref<16x32xbf16, #tpu.memory_space<vmem>>, vector<16x32xbf16>
    tpu.vector_store %arg4[%c0_9, %c0_10], %25 {strides = array<i32>} : memref<16x32xbf16, #tpu.memory_space<vmem>>, vector<16x32xbf16>,
    return
  }
  func.func @transform_0(%arg0: i32) -> (i32, i32) {
    %c0_i32 = arith.constant 0 : i32
    %c0_i32_0 = arith.constant 0 : i32
    return %arg0, %c0_i32 : i32, i32
  }
  func.func @transform_1(%arg0: i32) -> (i32, i32) {
    %c0_i32 = arith.constant 0 : i32
    %c0_i32_0 = arith.constant 0 : i32
    %c0_i32_1 = arith.constant 0 : i32
    return %c0_i32, %c0_i32_0 : i32, i32
  }
  func.func @transform_2(%arg0: i32) -> (i32, i32) {
    %c0_i32 = arith.constant 0 : i32
    %c0_i32_0 = arith.constant 0 : i32
    %c0_i32_1 = arith.constant 0 : i32
    return %c0_i32, %c0_i32_0 : i32, i32
  }
  func.func @transform_3(%arg0: i32) -> (i32, i32) {
    %c0_i32 = arith.constant 0 : i32
    %c0_i32_0 = arith.constant 0 : i32
    return %arg0, %c0_i32 : i32, i32
  }
}

</mosaic_0001>

<llo_original>
// kernel: tpu_custom_call.1
$region0: #{tpu_custom_call.1}
  #allocation0 [shape = 'u32[]', space=smem, size = 0x4, offset = 0x4, fixed_abs, tag = 'smem constant byte address 0x4 - core index']
  #allocation1 [shape = 'u32[144,128]{1,0:T(1,128)}', space=vmem, size = 0x12000, scoped, tag = 'internal scratch']
  %s0 = inlined_call_operand.hbm [shape: f32[16,32], index: 0, kind: input, shape index: {}]
  %s1 = inlined_call_operand.vmem [shape: f32[1,32], index: 1, kind: input, shape index: {}]
  %s2 = inlined_call_operand.vmem [shape: f32[1,32], index: 2, kind: input, shape index: {}]
  %s3 = inlined_call_operand.hbm [shape: bf16[16,32], index: 3, kind: output, shape index: {}]
  %s4 = sld [smem:[#allocation0]]
  $region26: #{tpu_custom_call.1} parent=0
    _
  %s6 = ssub.s32 1, %s4
  %s7 = scalar_select 0, %s6, %s4
  $region1: #{tpu_custom_call.1} parent=0
    #allocation2 [shape = 'u8[8192]{0}', space=vmem, size = 0x2000, scoped, tag = 'input window, operand 0, single buffered']
    #allocation3 [shape = 's32[1]{0}', space=sflag, size = 0x4, scoped, tag = 'scoped memory for tpu_custom_call.1']
    #allocation4 [shape = 's32[1]{0}', space=sflag, size = 0x4, scoped, tag = 'scoped memory for tpu_custom_call.1']
    #allocation5 [shape = 'u8[4096]{0}', space=vmem, size = 0x1000, scoped, tag = 'output window, operand 0, single buffered']
    %8 = vsyncpa [#allocation3], 0
    %9 = vsyncpa [#allocation4], 0
    // Predicated region
    $region2: #{tpu_custom_call.1} parent=1 // pred_check
      _
    $region3: #{tpu_custom_call.1} parent=1 // pred_check_branch
      %11 = sbr.rel (0) target = $region5
    $region4: #{tpu_custom_call.1} parent=1 // pred_region
      %s13 = ssub.s32 256, 256
      %14 = vsyncadd [#allocation3], %s13
      %s15 = sshll.u32 [#allocation2], 4
      %s16 = int_to_ptr.vmem [resolvable:$true] %s15
      %21 = dma.hbm_to_vmem [thread:$0]  %s0, 256, %s16, [#allocation3], 128, 128, 8
    $region5: #{tpu_custom_call.1} parent=1 // pred_fallthru
      _
    // Predicated region
    $region6: #{tpu_custom_call.1} parent=1 // pred_check
      _
    $region7: #{tpu_custom_call.1} parent=1 // pred_check_branch
      %23 = sbr.rel (0) target = $region9
    $region8: #{tpu_custom_call.1} parent=1 // pred_region
      _
    $region9: #{tpu_custom_call.1} parent=1 // pred_fallthru
      _
    // Predicated region
    $region10: #{tpu_custom_call.1} parent=1 // pred_check
      _
    $region11: #{tpu_custom_call.1} parent=1 // pred_check_branch
      %25 = sbr.rel (0) target = $region13
    $region12: #{tpu_custom_call.1} parent=1 // pred_region
      _
    $region13: #{tpu_custom_call.1} parent=1 // pred_fallthru
      _
    // Predicated region
    $region14: #{tpu_custom_call.1} parent=1 // pred_check
      _
    $region15: #{tpu_custom_call.1} parent=1 // pred_check_branch
      %27 = sbr.rel (0) target = $region17
    $region16: #{tpu_custom_call.1} parent=1 // pred_region
      %28 = dma.done [#allocation3], 256
    $region17: #{tpu_custom_call.1} parent=1 // pred_fallthru
      _
    %v29 = vld [vmem:[#allocation2] sm:$0xff]
    %v30 = vld [vmem:[#allocation2 + $0x8] sm:$0xff]
    %vm31 = vcmask 261120
    %v32 = vsel %vm31, %v29, 0.0
    %33 = vadd.xlane.f32.xlu0 %v32
    %v34 = vpop.xlane.xlu0 %33
    %v35 = vsel %vm31, %v30, 0.0
    %36 = vadd.xlane.f32.xlu0 %v35
    %v37 = vpop.xlane.xlu0 %36
    %v38 = vrcp.pop 32.0
    %v39 = vmul.f32 %v34, %v38
    %v40 = vmul.f32 %v37, %v38
    %v41 = vsub.f32 %v29, %v39
    %v42 = vsub.f32 %v30, %v40
    %v43 = vmul.f32 %v41, %v41
    %v44 = vmul.f32 %v42, %v42
    %v45 = vsel %vm31, %v43, 0.0
    %46 = vadd.xlane.f32.xlu0 %v45
    %v47 = vpop.xlane.xlu0 %46
    %v48 = vsel %vm31, %v44, 0.0
    %49 = vadd.xlane.f32.xlu0 %v48
    %v50 = vpop.xlane.xlu0 %49
    %v51 = vmul.f32 %v47, %v38
    %v52 = vmul.f32 %v50, %v38
    %v53 = vadd.f32 %v51, 1e-06
    %v54 = vadd.f32 %v52, 1e-06
    %v55 = vrsqrt.pop %v53
    %v56 = vrsqrt.pop %v54
    %v57 = vmul.f32 %v41, %v55
    %v58 = vmul.f32 %v42, %v56
    %v59 = vld [vmem:[%s1] sm:$0x1]
    %v61 = vlaneseq
    %v62 = vshrl.u32 %v61, 7
    %v63 = vsub.s32 0, %v62
    %v64 = vrot.slane %v59, %v63
    %v66 = vmul.f32 %v57, %v64
    %v67 = vmul.f32 %v58, %v64
    %v68 = vld [vmem:[%s2] sm:$0x1]
    %v70 = vlaneseq
    %v71 = vshrl.u32 %v70, 7
    %v72 = vsub.s32 0, %v71
    %v73 = vrot.slane %v68, %v72
    %v75 = vadd.f32 %v66, %v73
    %v76 = vadd.f32 %v67, %v73
    %v77 = vpack.c.bf16 %v76, %v75
    %v79 = vunpack.c.l.b16 %v77
    %v80 = vunpack.c.h.b16 %v77
    %v81 = vpack.c.b16 %v79, %v79
    %v82 = vpack.c.b16 %v80, %v80
    %vm85 = vcmask 257024
    %86 = vst.msk [vmem:[#allocation5] sm:$0xf] %vm85, %v81
    %87 = vst.msk [vmem:[#allocation5 + $0x4] sm:$0xf] %vm85, %v82
    // Predicated region
    $region18: #{tpu_custom_call.1} parent=1 // pred_check
      _
    $region19: #{tpu_custom_call.1} parent=1 // pred_check_branch
      %89 = sbr.rel (0) target = $region21
    $region20: #{tpu_custom_call.1} parent=1 // pred_region
      %s91 = ssub.s32 128, 128
      %92 = vsyncadd [#allocation4], %s91
      %s93 = sshll.u32 [#allocation5], 4
      %s94 = int_to_ptr.vmem [resolvable:$true] %s93
      %99 = dma.vmem_to_hbm [thread:$0]  %s94, 128, %s3, [#allocation4], 64, 64, 4
    $region21: #{tpu_custom_call.1} parent=1 // pred_fallthru
      _
    // Predicated region
    $region22: #{tpu_custom_call.1} parent=1 // pred_check
      _
    $region23: #{tpu_custom_call.1} parent=1 // pred_check_branch
      %101 = sbr.rel (0) target = $region25
    $region24: #{tpu_custom_call.1} parent=1 // pred_region
      %102 = dma.done [#allocation4], 128
    $region25: #{tpu_custom_call.1} parent=1 // pred_fallthru
      _
    %103 = vsyncpa [#allocation3], 1
    %104 = vsyncpa [#allocation4], 1

</llo_original>
